<compile_context>
chip_gen: v6e
topology: v6e:2x2x1
jax: 0.10.0
libtpu: 0.0.40
codegen_flags: <defaults>
</compile_context>

<pallas_src>
import jax
import jax.numpy as jnp
from jax.experimental import pallas as pl
from jax.experimental.pallas import tpu as pltpu


IN_DIM = 77
HID_DIM = 30
OUT_DIM = 10

# Max rows per batch tile.  VMEM footprint at TB=8192:
#   x  bf16 (8192, 77 -> 128 lanes) = 2 MiB  x 2 buffers = 4 MiB
#   out f32 (8192, 10 -> 128 lanes) = 4 MiB  x 2 buffers = 8 MiB
#   weights/biases: negligible
# ~12-14 MiB total -> fits every generation with vmem_limit_bytes = 32 MiB.
TB_MAX = 8192

# Once each of (up to) two grid blocks would get at least this many rows, force the
# grid to have >=2 blocks so v7x's two TensorCores both get work.
_MIN_ROWS_PER_CORE = 512


def _round_up(n, m):
    return ((n + m - 1) // m) * m


def _choose_tile(B):
    """Balanced batch tile: multiple of 8, <= TB_MAX, >=2 blocks for large batches."""
    n_blocks = pl.cdiv(B, TB_MAX)
    if B >= 2 * _MIN_ROWS_PER_CORE:
        n_blocks = max(n_blocks, 2)          # let both v7x TensorCores work
    return _round_up(pl.cdiv(B, n_blocks), 8)


def mlp_kernel(x_ref, w1_ref, b1_ref, w2_ref, b2_ref, o_ref):
    # Layer 1: Linear(77 -> 30) + ReLU.  bf16 operands, f32 accumulation.
    x = x_ref[...]                                                      # (TB, 77) bf16
    h = jnp.dot(x, w1_ref[...], preferred_element_type=jnp.float32)    # (TB, 30) f32
    h = jnp.maximum(h + b1_ref[...], 0.0)                              # f32 bias + ReLU

    # Layer 2: Linear(30 -> 10) + ReLU.  Cast activations to bf16 for the MXU.
    h = h.astype(jnp.bfloat16)
    y = jnp.dot(h, w2_ref[...], preferred_element_type=jnp.float32)    # (TB, 10) f32
    o_ref[...] = jnp.maximum(y + b2_ref[...], 0.0)


def prepare_params(w1, b1, w2, b2):
    """One-time param prep: transpose to (in, out), bf16 weights, f32 (1, out) biases."""
    w1t = jnp.asarray(w1, jnp.float32).T.astype(jnp.bfloat16)   # (77, 30) bf16
    w2t = jnp.asarray(w2, jnp.float32).T.astype(jnp.bfloat16)   # (30, 10) bf16
    b1r = jnp.asarray(b1, jnp.float32).reshape(1, -1)           # (1, 30)  f32
    b2r = jnp.asarray(b2, jnp.float32).reshape(1, -1)           # (1, 10)  f32
    return w1t, b1r, w2t, b2r


@jax.jit
def mlp_forward(x, w1t, b1r, w2t, b2r):
    """x: (B, 77). Params already prepped by prepare_params(). Returns (B, 10) f32."""
    # bf16 operand path for the MXU.  If the caller already supplies bf16 this is free;
    # otherwise the convert is a cheap one-shot pass (and fuses with any in-jit producer).
    x = jnp.asarray(x, jnp.bfloat16)
    B = x.shape[0]

    TB = _choose_tile(B)
    Bp = B
    if TB > B:
        # Only tiny, non-multiple-of-8 batches land here; the pad copy is negligible.
        x = jnp.pad(x, ((0, TB - B), (0, 0)))
        Bp = TB

    # Non-divisible grids are fine: the last block's out-of-bounds rows are
    # computed-and-discarded (rows are independent; OOB output rows are masked on
    # writeback).  NOTE: keep this invariant if the kernel is ever extended with any
    # reduction across batch rows.
    grid = (pl.cdiv(Bp, TB),)

    out = pl.pallas_call(
        mlp_kernel,
        out_shape=jax.ShapeDtypeStruct((Bp, OUT_DIM), jnp.float32),
        grid=grid,
        in_specs=[
            # x streams over the batch grid (double-buffered by Pallas).
            pl.BlockSpec((TB, IN_DIM), lambda i: (i, 0)),
            # Weights / biases: constant index -> DMA'd once, VMEM-resident.
            pl.BlockSpec((IN_DIM, HID_DIM), lambda i: (0, 0)),
            pl.BlockSpec((1, HID_DIM), lambda i: (0, 0)),
            pl.BlockSpec((HID_DIM, OUT_DIM), lambda i: (0, 0)),
            pl.BlockSpec((1, OUT_DIM), lambda i: (0, 0)),
        ],
        out_specs=pl.BlockSpec((TB, OUT_DIM), lambda i: (i, 0)),
        compiler_params=pltpu.CompilerParams(
            # Batch axis is embarrassingly parallel -> v7x shards it across both TCs.
            dimension_semantics=("parallel",),
            # Explicit budget: above the ~12-14 MiB footprint, above v5e's 16 MiB
            # scoped default, below v7x's 64 MiB physical VMEM.
            vmem_limit_bytes=32 * 1024 * 1024,
        ),
    )(x, w1t, b1r, w2t, b2r)

    return out[:B] if Bp != B else out


def _torch_linear_init(key, out_features, in_features):
    """Deterministic init matching torch.nn.Linear default: U(-1/sqrt(fan_in), +1/sqrt(fan_in))."""
    kw, kb = jax.random.split(key)
    bound = 1.0 / jnp.sqrt(jnp.float32(in_features))
    w = jax.random.uniform(kw, (out_features, in_features), jnp.float32, -bound, bound)
    b = jax.random.uniform(kb, (out_features,), jnp.float32, -bound, bound)
    return w, b


def _ref_forward(x, w1, b1, w2, b2):
    """Pure-f32 reference of the PyTorch module."""
    x = jnp.asarray(x, jnp.float32)
    return jnp.maximum(jnp.maximum(x @ w1.T + b1, 0.0) @ w2.T + b2, 0.0)


if __name__ == "__main__":
    key = jax.random.PRNGKey(0)
    k_x, k_x2, k_x3, k_l1, k_l2 = jax.random.split(key, 5)

    w1, b1 = _torch_linear_init(k_l1, HID_DIM, IN_DIM)   # Linear(77, 30)
    w2, b2 = _torch_linear_init(k_l2, OUT_DIM, HID_DIM)  # Linear(30, 10)
    params = prepare_params(w1, b1, w2, b2)              # hoisted out of the call path

    # bf16 operands vs f32 reference -> relaxed tolerance (bf16 has ~3 decimal digits).
    ATOL = 2e-2
    RTOL = 2e-2

    # Main small-shape run (multiple-of-8 batch, single block).
    B = 8
    x = jax.random.normal(k_x, (B, IN_DIM), jnp.float32)
    out = jax.block_until_ready(mlp_forward(x, *params))
    ref = _ref_forward(x, w1, b1, w2, b2)
    assert out.shape == (B, OUT_DIM)
    assert jnp.allclose(out, ref, atol=ATOL, rtol=RTOL)

    # Tiny non-multiple-of-8 batch: exercises the small-pad path.
    B2 = 13
    x2 = jax.random.normal(k_x2, (B2, IN_DIM), jnp.float32)
    out2 = jax.block_until_ready(mlp_forward(x2, *params))
    ref2 = _ref_forward(x2, w1, b1, w2, b2)
    assert out2.shape == (B2, OUT_DIM)
    assert jnp.allclose(out2, ref2, atol=ATOL, rtol=RTOL)

    # Multi-block, non-divisible batch: exercises the >=2-block parallel grid and the
    # masked (partially out-of-bounds) last block without any jnp.pad of x.
    B3 = 1037
    x3 = jax.random.normal(k_x3, (B3, IN_DIM), jnp.float32)
    out3 = jax.block_until_ready(mlp_forward(x3, *params))
    ref3 = _ref_forward(x3, w1, b1, w2, b2)
    assert out3.shape == (B3, OUT_DIM)
    assert jnp.allclose(out3, ref3, atol=ATOL, rtol=RTOL)

    print("KERNEL_OK")
</pallas_src>

<mosaic_0001>
module attributes {stable_mosaic.version = 11 : i64} {
  func.func @mlp_kernel(%arg0: i32, %arg1: memref<8x77xbf16, #tpu.memory_space<vmem>>, %arg2: memref<77x30xbf16, #tpu.memory_space<vmem>>, %arg3: memref<1x30xf32, #tpu.memory_space<vmem>>, %arg4: memref<30x10xbf16, #tpu.memory_space<vmem>>, %arg5: memref<1x10xf32, #tpu.memory_space<vmem>>, %arg6: memref<8x10xf32, #tpu.memory_space<vmem>>) attributes {dimension_semantics = [#tpu.dimension_semantics<parallel>], iteration_bounds = array<i64: 1>, scalar_prefetch = 0 : i64, scratch_operands = 0 : i64, tpu.core_type = #tpu.core_type<tc>, window_params = [{transform_indices = @transform_0, window_bounds = array<i64: 8, 77>}, {pipeline_mode = #tpu.pipeline_mode<synchronous>, transform_indices = @transform_1, window_bounds = array<i64: 77, 30>}, {pipeline_mode = #tpu.pipeline_mode<synchronous>, transform_indices = @transform_2, window_bounds = array<i64: 1, 30>}, {pipeline_mode = #tpu.pipeline_mode<synchronous>, transform_indices = @transform_3, window_bounds = array<i64: 30, 10>}, {pipeline_mode = #tpu.pipeline_mode<synchronous>, transform_indices = @transform_4, window_bounds = array<i64: 1, 10>}, {transform_indices = @transform_5, window_bounds = array<i64: 8, 10>}]} {
    %c0 = arith.constant 0 : index
    %c0_0 = arith.constant 0 : index
    %0 = vector.load %arg1[%c0, %c0_0] : memref<8x77xbf16, #tpu.memory_space<vmem>>, vector<8x77xbf16>
    %c0_1 = arith.constant 0 : index
    %c0_2 = arith.constant 0 : index
    %1 = vector.load %arg2[%c0_1, %c0_2] : memref<77x30xbf16, #tpu.memory_space<vmem>>, vector<77x30xbf16>
    %cst = arith.constant dense<0.000000e+00> : vector<8x30xf32>
    %2 = tpu.matmul %0, %1, %cst {dimension_numbers = #tpu.dot_dimension_numbers<[1], [0], [0], [1], [0, 0, 1, 1], [], []>} : vector<8x77xbf16>, vector<77x30xbf16>, vector<8x30xf32> -> vector<8x30xf32>
    %c0_3 = arith.constant 0 : index
    %c0_4 = arith.constant 0 : index
    %3 = vector.load %arg3[%c0_3, %c0_4] : memref<1x30xf32, #tpu.memory_space<vmem>>, vector<1x30xf32>
    %4 = vector.broadcast %3 : vector<1x30xf32> to vector<8x30xf32>
    %5 = arith.addf %2, %4 : vector<8x30xf32>
    %cst_5 = arith.constant 0.000000e+00 : f32
    %6 = vector.broadcast %cst_5 : f32 to vector<8x30xf32>
    %7 = arith.maximumf %5, %6 : vector<8x30xf32>
    %8 = arith.truncf %7 : vector<8x30xf32> to vector<8x30xbf16>
    %c0_6 = arith.constant 0 : index
    %c0_7 = arith.constant 0 : index
    %9 = vector.load %arg4[%c0_6, %c0_7] : memref<30x10xbf16, #tpu.memory_space<vmem>>, vector<30x10xbf16>
    %cst_8 = arith.constant dense<0.000000e+00> : vector<8x10xf32>
    %10 = tpu.matmul %8, %9, %cst_8 {dimension_numbers = #tpu.dot_dimension_numbers<[1], [0], [0], [1], [0, 0, 1, 1], [], []>} : vector<8x30xbf16>, vector<30x10xbf16>, vector<8x10xf32> -> vector<8x10xf32>
    %c0_9 = arith.constant 0 : index
    %c0_10 = arith.constant 0 : index
    %11 = vector.load %arg5[%c0_9, %c0_10] : memref<1x10xf32, #tpu.memory_space<vmem>>, vector<1x10xf32>
    %12 = vector.broadcast %11 : vector<1x10xf32> to vector<8x10xf32>
    %13 = arith.addf %10, %12 : vector<8x10xf32>
    %cst_11 = arith.constant 0.000000e+00 : f32
    %14 = vector.broadcast %cst_11 : f32 to vector<8x10xf32>
    %15 = arith.maximumf %13, %14 : vector<8x10xf32>
    %c0_12 = arith.constant 0 : index
    %c0_13 = arith.constant 0 : index
    %16 = vector.load %arg6[%c0_12, %c0_13] : memref<8x10xf32, #tpu.memory_space<vmem>>, vector<8x10xf32>
    tpu.vector_store %arg6[%c0_12, %c0_13], %15 {strides = array<i32>} : memref<8x10xf32, #tpu.memory_space<vmem>>, vector<8x10xf32>,
    return
  }
  func.func @transform_0(%arg0: i32) -> (i32, i32) {
    %c0_i32 = arith.constant 0 : i32
    %c0_i32_0 = arith.constant 0 : i32
    return %arg0, %c0_i32 : i32, i32
  }
  func.func @transform_1(%arg0: i32) -> (i32, i32) {
    %c0_i32 = arith.constant 0 : i32
    %c0_i32_0 = arith.constant 0 : i32
    %c0_i32_1 = arith.constant 0 : i32
    return %c0_i32, %c0_i32_0 : i32, i32
  }
  func.func @transform_2(%arg0: i32) -> (i32, i32) {
    %c0_i32 = arith.constant 0 : i32
    %c0_i32_0 = arith.constant 0 : i32
    %c0_i32_1 = arith.constant 0 : i32
    return %c0_i32, %c0_i32_0 : i32, i32
  }
  func.func @transform_3(%arg0: i32) -> (i32, i32) {
    %c0_i32 = arith.constant 0 : i32
    %c0_i32_0 = arith.constant 0 : i32
    %c0_i32_1 = arith.constant 0 : i32
    return %c0_i32, %c0_i32_0 : i32, i32
  }
  func.func @transform_4(%arg0: i32) -> (i32, i32) {
    %c0_i32 = arith.constant 0 : i32
    %c0_i32_0 = arith.constant 0 : i32
    %c0_i32_1 = arith.constant 0 : i32
    return %c0_i32, %c0_i32_0 : i32, i32
  }
  func.func @transform_5(%arg0: i32) -> (i32, i32) {
    %c0_i32 = arith.constant 0 : i32
    %c0_i32_0 = arith.constant 0 : i32
    return %arg0, %c0_i32 : i32, i32
  }
}

</mosaic_0001>

<llo_original>
// kernel: mlp_forward.1
$region0: #{mlp_forward.1}
  #allocation0 [shape = 'u32[]', space=smem, size = 0x4, offset = 0x4, fixed_abs, tag = 'smem constant byte address 0x4 - core index']
  #allocation1 [shape = 'u32[144,128]{1,0:T(1,128)}', space=vmem, size = 0x12000, scoped, tag = 'internal scratch']
  %s0 = inlined_call_operand.vmem [shape: bf16[8,77], index: 0, kind: input, shape index: {}]
  %s1 = inlined_call_operand.vmem [shape: bf16[77,30], index: 1, kind: input, shape index: {}]
  %s2 = inlined_call_operand.vmem [shape: f32[1,30], index: 2, kind: input, shape index: {}]
  %s3 = inlined_call_operand.vmem [shape: bf16[30,10], index: 3, kind: input, shape index: {}]
  %s4 = inlined_call_operand.vmem [shape: f32[1,10], index: 4, kind: input, shape index: {}]
  %s5 = inlined_call_operand.hbm [shape: f32[8,10], index: 5, kind: output, shape index: {}]
  %s6 = sld [smem:[#allocation0]]
  $region30: #{mlp_forward.1} parent=0
    _
  %s8 = ssub.s32 1, %s6
  %s9 = scalar_select 0, %s8, %s6
  $region1: #{mlp_forward.1} parent=0
    #allocation2 [shape = 'u8[4096]{0}', space=vmem, size = 0x1000, scoped, tag = 'output window, operand 0, single buffered']
    #allocation3 [shape = 's32[1]{0}', space=sflag, size = 0x4, scoped, tag = 'scoped memory for mlp_forward.1']
    %10 = vsyncpa [#allocation3], 0
    // Predicated region
    $region2: #{mlp_forward.1} parent=1 // pred_check
      _
    $region3: #{mlp_forward.1} parent=1 // pred_check_branch
      %12 = sbr.rel (0) target = $region5
    $region4: #{mlp_forward.1} parent=1 // pred_region
      _
    $region5: #{mlp_forward.1} parent=1 // pred_fallthru
      _
    // Predicated region
    $region6: #{mlp_forward.1} parent=1 // pred_check
      _
    $region7: #{mlp_forward.1} parent=1 // pred_check_branch
      %14 = sbr.rel (0) target = $region9
    $region8: #{mlp_forward.1} parent=1 // pred_region
      _
    $region9: #{mlp_forward.1} parent=1 // pred_fallthru
      _
    // Predicated region
    $region10: #{mlp_forward.1} parent=1 // pred_check
      _
    $region11: #{mlp_forward.1} parent=1 // pred_check_branch
      %16 = sbr.rel (0) target = $region13
    $region12: #{mlp_forward.1} parent=1 // pred_region
      _
    $region13: #{mlp_forward.1} parent=1 // pred_fallthru
      _
    // Predicated region
    $region14: #{mlp_forward.1} parent=1 // pred_check
      _
    $region15: #{mlp_forward.1} parent=1 // pred_check_branch
      %18 = sbr.rel (0) target = $region17
    $region16: #{mlp_forward.1} parent=1 // pred_region
      _
    $region17: #{mlp_forward.1} parent=1 // pred_fallthru
      _
    // Predicated region
    $region18: #{mlp_forward.1} parent=1 // pred_check
      _
    $region19: #{mlp_forward.1} parent=1 // pred_check_branch
      %20 = sbr.rel (0) target = $region21
    $region20: #{mlp_forward.1} parent=1 // pred_region
      _
    $region21: #{mlp_forward.1} parent=1 // pred_fallthru
      _
    %v22 = vld [vmem:[%s0] sm:$0xf]
    %v23 = vld [vmem:[%s1] sm:$0xf]
    %v24 = vld [vmem:[%s1 + $0x4] sm:$0xf]
    %v25 = vld [vmem:[%s1 + $0x8] sm:$0xf]
    %v26 = vld [vmem:[%s1 + $0xc] sm:$0xf]
    %v27 = vld [vmem:[%s1 + $0x10] sm:$0xf]
    %v28 = vld [vmem:[%s1 + $0x14] sm:$0xf]
    %v29 = vld [vmem:[%s1 + $0x18] sm:$0xf]
    %v30 = vld [vmem:[%s1 + $0x1c] sm:$0xf]
    %v31 = vld [vmem:[%s1 + $0x20] sm:$0xf]
    %v32 = vld [vmem:[%s1 + $0x24] sm:$0x7]
    %v33 = vld [vmem:[%s2] sm:$0x1]
    %v35 = vlaneseq
    %v36 = vshrl.u32 %v35, 7
    %v37 = vsub.s32 0, %v36
    %v38 = vrot.slane %v33, %v37
    %v50 = vunpack.c.l.b16 %v23
    %v51 = vunpack.c.l.b16 %v24
    %v52 = vunpack.c.l.b16 %v25
    %v53 = vunpack.c.l.b16 %v26
    %v54 = vunpack.c.l.b16 %v27
    %v55 = vunpack.c.l.b16 %v28
    %v56 = vunpack.c.l.b16 %v29
    %v57 = vunpack.c.l.b16 %v30
    %v58 = vunpack.c.l.b16 %v31
    %v59 = vunpack.c.l.b16 %v32
    %v60 = vpack.c.b16 %v51, %v50
    %v61 = vpack.c.b16 %v53, %v52
    %v62 = vpack.c.b16 %v55, %v54
    %v63 = vpack.c.b16 %v57, %v56
    %v64 = vpack.c.b16 %v59, %v58
    %vm69 = vcmask 629760
    %v71 = vsel %vm69, %v22, 0
    %vm73 = vcmask 1045504
    %vm74 = vcmask 1046528
    %v75 = vsel %vm73, 4294967295, 65535
    %v76 = vsel %vm74, %v75, 0
    %v78 = vand.u32 %v64, %v76
    %80 = vmatprep.subr.bf16.mxu0 0
    %81 = vmatpush1.bf16.msra.mxu0 0
    %82 = vmatprep.subr.bf16.mxu0 0
    %83 = vmatpush1.bf16.msra.mxu0 0
    %84 = vmatprep.subr.bf16.mxu0 0
    %85 = vmatpush1.bf16.msra.mxu0 0
    %86 = vmatprep.subr.bf16.mxu0 0
    %87 = vmatpush1.bf16.msra.mxu0 %v78
    %88 = vmatprep.subr.bf16.mxu0 0
    %89 = vmatpush1.bf16.msra.mxu0 %v63
    %90 = vmatprep.subr.bf16.mxu0 0
    %91 = vmatpush1.bf16.msra.mxu0 %v62
    %92 = vmatprep.subr.bf16.mxu0 0
    %93 = vmatpush1.bf16.msra.mxu0 %v61
    %94 = vmatprep.subr.bf16.mxu0 0
    %95 = vmatpush1.bf16.msra.mxu0 %v60
    %96 = vmatprep.subr.bf16.mxu0 0
    %97 = vmatpush2.bf16.msra.mxu0 0
    %98 = vmatprep.subr.bf16.mxu0 0
    %99 = vmatpush2.bf16.msra.mxu0 0
    %100 = vmatprep.subr.bf16.mxu0 0
    %101 = vmatpush2.bf16.msra.mxu0 0
    %102 = vmatprep.subr.bf16.mxu0 0
    %103 = vmatpush2.bf16.msra.mxu0 0
    %104 = vmatprep.subr.bf16.mxu0 0
    %105 = vmatpush2.bf16.msra.mxu0 0
    %106 = vmatprep.subr.bf16.mxu0 0
    %107 = vmatpush2.bf16.msra.mxu0 0
    %108 = vmatprep.subr.bf16.mxu0 0
    %109 = vmatpush2.bf16.msra.mxu0 0
    %110 = vmatprep.subr.bf16.mxu0 0
    %111 = vmatpush2.bf16.msra.mxu0 0
    %112 = vmatprep.mubr.bf16.mxu0 0
    %113 = vmatmul.mubr.bf16.gmra.mxu0 %v71
    %v114 = vpop.f32.mrf.mxu0
    %v115 = vadd.f32 %v38, %v114
    %v116 = vpop.f32.mrf.mxu0
    %v117 = vpop.f32.mrf.mxu0
    %v118 = vpop.f32.mrf.mxu0
    %119 = vdwg.mxu0
    %v120 = vmax.f32 %v115, 0.0
    %v121 = vpack.c.bf16 %v120, %v120
    %v122 = vld [vmem:[%s3] sm:$0xf]
    %v123 = vld [vmem:[%s3 + $0x4] sm:$0xf]
    %v124 = vld [vmem:[%s3 + $0x8] sm:$0xf]
    %v125 = vld [vmem:[%s3 + $0xc] sm:$0x7]
    %v126 = vld [vmem:[%s4] sm:$0x1]
    %v128 = vlaneseq
    %v129 = vshrl.u32 %v128, 7
    %v130 = vsub.s32 0, %v129
    %v131 = vrot.slane %v126, %v130
    %v137 = vunpack.c.l.b16 %v122
    %v138 = vunpack.c.l.b16 %v123
    %v139 = vunpack.c.l.b16 %v124
    %v140 = vunpack.c.l.b16 %v125
    %v141 = vpack.c.b16 %v138, %v137
    %v142 = vpack.c.b16 %v140, %v139
    %vm144 = vcmask 244736
    %v146 = vsel %vm144, %v121, 0
    %v149 = vsel %vm74, %v142, 0
    %151 = vmatprep.subr.bf16.mxu0 0
    %152 = vmatpush1.bf16.msra.mxu0 0
    %153 = vmatprep.subr.bf16.mxu0 0
    %154 = vmatpush1.bf16.msra.mxu0 0
    %155 = vmatprep.subr.bf16.mxu0 0
    %156 = vmatpush1.bf16.msra.mxu0 0
    %157 = vmatprep.subr.bf16.mxu0 0
    %158 = vmatpush1.bf16.msra.mxu0 0
    %159 = vmatprep.subr.bf16.mxu0 0
    %160 = vmatpush1.bf16.msra.mxu0 0
    %161 = vmatprep.subr.bf16.mxu0 0
    %162 = vmatpush1.bf16.msra.mxu0 0
    %163 = vmatprep.subr.bf16.mxu0 0
    %164 = vmatpush1.bf16.msra.mxu0 %v149
    %165 = vmatprep.subr.bf16.mxu0 0
    %166 = vmatpush1.bf16.msra.mxu0 %v141
    %167 = vmatprep.subr.bf16.mxu0 0
    %168 = vmatpush2.bf16.msra.mxu0 0
    %169 = vmatprep.subr.bf16.mxu0 0
    %170 = vmatpush2.bf16.msra.mxu0 0
    %171 = vmatprep.subr.bf16.mxu0 0
    %172 = vmatpush2.bf16.msra.mxu0 0
    %173 = vmatprep.subr.bf16.mxu0 0
    %174 = vmatpush2.bf16.msra.mxu0 0
    %175 = vmatprep.subr.bf16.mxu0 0
    %176 = vmatpush2.bf16.msra.mxu0 0
    %177 = vmatprep.subr.bf16.mxu0 0
    %178 = vmatpush2.bf16.msra.mxu0 0
    %179 = vmatprep.subr.bf16.mxu0 0
    %180 = vmatpush2.bf16.msra.mxu0 0
    %181 = vmatprep.subr.bf16.mxu0 0
    %182 = vmatpush2.bf16.msra.mxu0 0
    %183 = vmatprep.mubr.bf16.mxu0 0
    %184 = vmatmul.mubr.bf16.gmra.mxu0 %v146
    %v185 = vpop.f32.mrf.mxu0
    %v186 = vadd.f32 %v131, %v185
    %v187 = vpop.f32.mrf.mxu0
    %v188 = vpop.f32.mrf.mxu0
    %v189 = vpop.f32.mrf.mxu0
    %190 = vdwg.mxu0
    %v191 = vmax.f32 %v186, 0.0
    %vm192 = vcmask 80896
    %193 = vst.msk [vmem:[#allocation2] sm:$0xff] %vm192, %v191
    // Predicated region
    $region22: #{mlp_forward.1} parent=1 // pred_check
      _
    $region23: #{mlp_forward.1} parent=1 // pred_check_branch
      %195 = sbr.rel (0) target = $region25
    $region24: #{mlp_forward.1} parent=1 // pred_region
      %s197 = ssub.s32 128, 128
      %198 = vsyncadd [#allocation3], %s197
      %s200 = sshll.u32 [#allocation2], 4
      %s201 = int_to_ptr.vmem [resolvable:$true] %s200
      %203 = dma.vmem_to_hbm [thread:$0]  %s201, 128, %s5, [#allocation3]
    $region25: #{mlp_forward.1} parent=1 // pred_fallthru
      _
    // Predicated region
    $region26: #{mlp_forward.1} parent=1 // pred_check
      _
    $region27: #{mlp_forward.1} parent=1 // pred_check_branch
      %205 = sbr.rel (0) target = $region29
    $region28: #{mlp_forward.1} parent=1 // pred_region
      %206 = dma.done [#allocation3], 128
    $region29: #{mlp_forward.1} parent=1 // pred_fallthru
      _
    %207 = vsyncpa [#allocation3], 1

</llo_original>
